<compile_context>
chip_gen: v7x
topology: tpu7x:2x2x1
jax: 0.10.0
libtpu: 0.0.40
codegen_flags: <defaults>
</compile_context>

<pallas_src>
import numpy as np
import jax
import jax.numpy as jnp
from jax.experimental import pallas as pl
from jax.experimental.pallas import tpu as pltpu

# ----- module hyper-params (params.dense_sampling_L etc.) -----
DENSE_SAMPLING_L = 16      # dense grid length per ADC
NUM_OF_ADC_P = 4           # number of ADCs
NUM_SAMPLES_L_TILDE = 8    # sparse samples kept per ADC
BATCH = 512                # batch: 2 x 256 tiles -> grid of 2 ("parallel")


def _round_up(n, m):
    return ((n + m - 1) // m) * m


def hard_sampling_kernel(idx_ref, x_ref, o_ref, xt_ref, ot_ref):
    """Per-tile gather of feature columns, done on sublanes after an in-VMEM
    lane-aligned transpose.

    idx_ref : SMEM (cout,) int32           — flat gather indices (scalar prefetch)
    x_ref   : VMEM (bt, cin)               — input tile, natural layout
    o_ref   : VMEM (bt, cout)              — output tile, natural layout
    xt_ref  : VMEM (cin_pad, bt) scratch   — transposed input (features on sublanes)
    ot_ref  : VMEM (cout_pad, bt) scratch  — transposed output
    """
    bt, cin = x_ref.shape
    cout = o_ref.shape[1]
    cin_pad = xt_ref.shape[0]

    # 1) Put features on sublanes.  Pad the lane axis to a multiple of 128 so
    #    the transpose is fully tile-aligned (native XLU path).
    xv = x_ref[...]
    if cin_pad > cin:
        xv = jnp.concatenate(
            [xv, jnp.zeros((bt, cin_pad - cin), xv.dtype)], axis=1)
    xt_ref[...] = xv.T                                     # (cin_pad, bt)

    # 2) Gather: one dynamic-sublane row copy per output feature.
    #    cout is small (P * L_tilde, e.g. 32) -> static unroll.
    for c in range(cout):
        ot_ref[pl.ds(c, 1), :] = xt_ref[pl.ds(idx_ref[c], 1), :]

    # 3) Transpose back (aligned: cout_pad x bt -> bt x cout_pad) and drop the
    #    padding lanes.  Rows >= cout of ot_ref are never read meaningfully:
    #    their values end up in the sliced-off padding lanes.
    o_ref[...] = ot_ref[...].T[:, :cout]


def hard_sampling(x, flat_idx, *, batch_tile=256):
    """out[b, i*Lt + j] = x[b, flat_idx[i*Lt + j]]  (pure column gather)."""
    B, cin = x.shape
    cout = int(flat_idx.shape[0])
    cin_pad = _round_up(cin, 128)
    cout_pad = _round_up(cout, 128)

    # Batch tile: multiple of 128 (lane width of the transposed tiles).
    bt = max(128, min(batch_tile, _round_up(B, 128)))
    while bt > 128 and B % bt != 0:
        bt //= 2
    pad_b = (-B) % bt
    xp = jnp.pad(x, ((0, pad_b), (0, 0))) if pad_b else x
    Bp = B + pad_b

    out = pl.pallas_call(
        hard_sampling_kernel,
        out_shape=jax.ShapeDtypeStruct((Bp, cout), x.dtype),
        grid_spec=pltpu.PrefetchScalarGridSpec(
            num_scalar_prefetch=1,
            grid=(Bp // bt,),
            in_specs=[pl.BlockSpec((bt, cin), lambda b, idx: (b, 0))],
            out_specs=pl.BlockSpec((bt, cout), lambda b, idx: (b, 0)),
            scratch_shapes=[pltpu.VMEM((cin_pad, bt), x.dtype),
                            pltpu.VMEM((cout_pad, bt), x.dtype)],
        ),
        compiler_params=pltpu.CompilerParams(
            dimension_semantics=("parallel",)),
    )(flat_idx, xp)
    return out[:B] if pad_b else out


def build_flat_indices(weight_idx, P, L, Lt):
    # flat_idx[i*Lt + j] = i*L + weight[j]
    idx = (np.arange(P)[:, None] * L + weight_idx[None, :]).reshape(-1)
    return jnp.asarray(idx.astype(np.int32))


if __name__ == "__main__":
    key = jax.random.PRNGKey(0)
    kx, kw = jax.random.split(key)

    # Learned dense-sampling positions, processed as HardSamplingLayer.__init__:
    raw_w = jax.random.uniform(
        kw, (NUM_SAMPLES_L_TILDE,), minval=0.0,
        maxval=float(DENSE_SAMPLING_L - 1))
    w = np.round(np.asarray(raw_w))
    # Clamp to the valid index range [1, L-1].  (The original PyTorch clamp
    # checks `w > L`, which leaves w == L unclamped and would index out of
    # range; we use the intended bound L-1.)
    w = np.clip(w, 1, DENSE_SAMPLING_L - 1).astype(np.int64)

    flat_idx = build_flat_indices(w, NUM_OF_ADC_P, DENSE_SAMPLING_L,
                                  NUM_SAMPLES_L_TILDE)

    x = jax.random.normal(
        kx, (BATCH, NUM_OF_ADC_P * DENSE_SAMPLING_L), dtype=jnp.float32)

    # TODO(synk): PyTorch forward returns float64; TPU has no f64 path, so the
    # kernel returns float32 (bit-identical values: the op is a pure gather).
    out = jax.block_until_ready(hard_sampling(x, flat_idx))

    # Reference check against the literal double-loop gather semantics.
    x_np = np.asarray(x)
    ref = np.zeros((BATCH, NUM_OF_ADC_P * NUM_SAMPLES_L_TILDE), np.float32)
    for i in range(NUM_OF_ADC_P):
        for j in range(NUM_SAMPLES_L_TILDE):
            ref[:, i * NUM_SAMPLES_L_TILDE + j] = (
                x_np[:, i * DENSE_SAMPLING_L + int(w[j])])
    assert np.array_equal(np.asarray(out), ref), "Pallas output mismatch"

    print("KERNEL_OK")
</pallas_src>

<mosaic_0001>
module attributes {stable_mosaic.version = 11 : i64} {
  func.func @hard_sampling_kernel(%arg0: i32, %arg1: memref<32xi32, #tpu.memory_space<smem>>, %arg2: memref<256x64xf32, #tpu.memory_space<vmem>>, %arg3: memref<256x32xf32, #tpu.memory_space<vmem>>, %arg4: memref<128x256xf32, #tpu.memory_space<vmem>>, %arg5: memref<128x256xf32, #tpu.memory_space<vmem>>) attributes {dimension_semantics = [#tpu.dimension_semantics<parallel>], iteration_bounds = array<i64: 2>, scalar_prefetch = 1 : i64, scratch_operands = 2 : i64, tpu.core_type = #tpu.core_type<tc>, window_params = [{transform_indices = @transform_0, window_bounds = array<i64: 256, 64>}, {transform_indices = @transform_1, window_bounds = array<i64: 256, 32>}]} {
    %c0 = arith.constant 0 : index
    %c0_0 = arith.constant 0 : index
    %0 = vector.load %arg2[%c0, %c0_0] : memref<256x64xf32, #tpu.memory_space<vmem>>, vector<256x64xf32>
    %cst = arith.constant 0.000000e+00 : f32
    %1 = vector.broadcast %cst : f32 to vector<256x64xf32>
    %2 = tpu.concatenate %0, %1 in 1 : vector<256x64xf32>, vector<256x64xf32> -> vector<256x128xf32>
    %3 = tpu.transpose %2, [1, 0] : vector<256x128xf32> -> vector<128x256xf32>
    %c0_1 = arith.constant 0 : index
    %c0_2 = arith.constant 0 : index
    %4 = vector.load %arg4[%c0_1, %c0_2] : memref<128x256xf32, #tpu.memory_space<vmem>>, vector<128x256xf32>
    tpu.vector_store %arg4[%c0_1, %c0_2], %3 {strides = array<i32>} : memref<128x256xf32, #tpu.memory_space<vmem>>, vector<128x256xf32>,
    %c0_3 = arith.constant 0 : index
    %5 = memref.load %arg1[%c0_3] : memref<32xi32, #tpu.memory_space<smem>>
    %6 = arith.index_cast %5 : i32 to index
    %c0_4 = arith.constant 0 : index
    %7 = vector.load %arg4[%6, %c0_4] : memref<128x256xf32, #tpu.memory_space<vmem>>, vector<1x256xf32>
    %c0_5 = arith.constant 0 : index
    %c0_6 = arith.constant 0 : index
    %8 = vector.load %arg5[%c0_5, %c0_6] : memref<128x256xf32, #tpu.memory_space<vmem>>, vector<1x256xf32>
    tpu.vector_store %arg5[%c0_5, %c0_6], %7 {strides = array<i32>} : memref<128x256xf32, #tpu.memory_space<vmem>>, vector<1x256xf32>,
    %c1 = arith.constant 1 : index
    %9 = memref.load %arg1[%c1] : memref<32xi32, #tpu.memory_space<smem>>
    %10 = arith.index_cast %9 : i32 to index
    %c0_7 = arith.constant 0 : index
    %11 = vector.load %arg4[%10, %c0_7] : memref<128x256xf32, #tpu.memory_space<vmem>>, vector<1x256xf32>
    %c1_8 = arith.constant 1 : index
    %c0_9 = arith.constant 0 : index
    %12 = vector.load %arg5[%c1_8, %c0_9] : memref<128x256xf32, #tpu.memory_space<vmem>>, vector<1x256xf32>
    tpu.vector_store %arg5[%c1_8, %c0_9], %11 {strides = array<i32>} : memref<128x256xf32, #tpu.memory_space<vmem>>, vector<1x256xf32>,
    %c2 = arith.constant 2 : index
    %13 = memref.load %arg1[%c2] : memref<32xi32, #tpu.memory_space<smem>>
    %14 = arith.index_cast %13 : i32 to index
    %c0_10 = arith.constant 0 : index
    %15 = vector.load %arg4[%14, %c0_10] : memref<128x256xf32, #tpu.memory_space<vmem>>, vector<1x256xf32>
    %c2_11 = arith.constant 2 : index
    %c0_12 = arith.constant 0 : index
    %16 = vector.load %arg5[%c2_11, %c0_12] : memref<128x256xf32, #tpu.memory_space<vmem>>, vector<1x256xf32>
    tpu.vector_store %arg5[%c2_11, %c0_12], %15 {strides = array<i32>} : memref<128x256xf32, #tpu.memory_space<vmem>>, vector<1x256xf32>,
    %c3 = arith.constant 3 : index
    %17 = memref.load %arg1[%c3] : memref<32xi32, #tpu.memory_space<smem>>
    %18 = arith.index_cast %17 : i32 to index
    %c0_13 = arith.constant 0 : index
    %19 = vector.load %arg4[%18, %c0_13] : memref<128x256xf32, #tpu.memory_space<vmem>>, vector<1x256xf32>
    %c3_14 = arith.constant 3 : index
    %c0_15 = arith.constant 0 : index
    %20 = vector.load %arg5[%c3_14, %c0_15] : memref<128x256xf32, #tpu.memory_space<vmem>>, vector<1x256xf32>
    tpu.vector_store %arg5[%c3_14, %c0_15], %19 {strides = array<i32>} : memref<128x256xf32, #tpu.memory_space<vmem>>, vector<1x256xf32>,
    %c4 = arith.constant 4 : index
    %21 = memref.load %arg1[%c4] : memref<32xi32, #tpu.memory_space<smem>>
    %22 = arith.index_cast %21 : i32 to index
    %c0_16 = arith.constant 0 : index
    %23 = vector.load %arg4[%22, %c0_16] : memref<128x256xf32, #tpu.memory_space<vmem>>, vector<1x256xf32>
    %c4_17 = arith.constant 4 : index
    %c0_18 = arith.constant 0 : index
    %24 = vector.load %arg5[%c4_17, %c0_18] : memref<128x256xf32, #tpu.memory_space<vmem>>, vector<1x256xf32>
    tpu.vector_store %arg5[%c4_17, %c0_18], %23 {strides = array<i32>} : memref<128x256xf32, #tpu.memory_space<vmem>>, vector<1x256xf32>,
    %c5 = arith.constant 5 : index
    %25 = memref.load %arg1[%c5] : memref<32xi32, #tpu.memory_space<smem>>
    %26 = arith.index_cast %25 : i32 to index
    %c0_19 = arith.constant 0 : index
    %27 = vector.load %arg4[%26, %c0_19] : memref<128x256xf32, #tpu.memory_space<vmem>>, vector<1x256xf32>
    %c5_20 = arith.constant 5 : index
    %c0_21 = arith.constant 0 : index
    %28 = vector.load %arg5[%c5_20, %c0_21] : memref<128x256xf32, #tpu.memory_space<vmem>>, vector<1x256xf32>
    tpu.vector_store %arg5[%c5_20, %c0_21], %27 {strides = array<i32>} : memref<128x256xf32, #tpu.memory_space<vmem>>, vector<1x256xf32>,
    %c6 = arith.constant 6 : index
    %29 = memref.load %arg1[%c6] : memref<32xi32, #tpu.memory_space<smem>>
    %30 = arith.index_cast %29 : i32 to index
    %c0_22 = arith.constant 0 : index
    %31 = vector.load %arg4[%30, %c0_22] : memref<128x256xf32, #tpu.memory_space<vmem>>, vector<1x256xf32>
    %c6_23 = arith.constant 6 : index
    %c0_24 = arith.constant 0 : index
    %32 = vector.load %arg5[%c6_23, %c0_24] : memref<128x256xf32, #tpu.memory_space<vmem>>, vector<1x256xf32>
    tpu.vector_store %arg5[%c6_23, %c0_24], %31 {strides = array<i32>} : memref<128x256xf32, #tpu.memory_space<vmem>>, vector<1x256xf32>,
    %c7 = arith.constant 7 : index
    %33 = memref.load %arg1[%c7] : memref<32xi32, #tpu.memory_space<smem>>
    %34 = arith.index_cast %33 : i32 to index
    %c0_25 = arith.constant 0 : index
    %35 = vector.load %arg4[%34, %c0_25] : memref<128x256xf32, #tpu.memory_space<vmem>>, vector<1x256xf32>
    %c7_26 = arith.constant 7 : index
    %c0_27 = arith.constant 0 : index
    %36 = vector.load %arg5[%c7_26, %c0_27] : memref<128x256xf32, #tpu.memory_space<vmem>>, vector<1x256xf32>
    tpu.vector_store %arg5[%c7_26, %c0_27], %35 {strides = array<i32>} : memref<128x256xf32, #tpu.memory_space<vmem>>, vector<1x256xf32>,
    %c8 = arith.constant 8 : index
    %37 = memref.load %arg1[%c8] : memref<32xi32, #tpu.memory_space<smem>>
    %38 = arith.index_cast %37 : i32 to index
    %c0_28 = arith.constant 0 : index
    %39 = vector.load %arg4[%38, %c0_28] : memref<128x256xf32, #tpu.memory_space<vmem>>, vector<1x256xf32>
    %c8_29 = arith.constant 8 : index
    %c0_30 = arith.constant 0 : index
    %40 = vector.load %arg5[%c8_29, %c0_30] : memref<128x256xf32, #tpu.memory_space<vmem>>, vector<1x256xf32>
    tpu.vector_store %arg5[%c8_29, %c0_30], %39 {strides = array<i32>} : memref<128x256xf32, #tpu.memory_space<vmem>>, vector<1x256xf32>,
    %c9 = arith.constant 9 : index
    %41 = memref.load %arg1[%c9] : memref<32xi32, #tpu.memory_space<smem>>
    %42 = arith.index_cast %41 : i32 to index
    %c0_31 = arith.constant 0 : index
    %43 = vector.load %arg4[%42, %c0_31] : memref<128x256xf32, #tpu.memory_space<vmem>>, vector<1x256xf32>
    %c9_32 = arith.constant 9 : index
    %c0_33 = arith.constant 0 : index
    %44 = vector.load %arg5[%c9_32, %c0_33] : memref<128x256xf32, #tpu.memory_space<vmem>>, vector<1x256xf32>
    tpu.vector_store %arg5[%c9_32, %c0_33], %43 {strides = array<i32>} : memref<128x256xf32, #tpu.memory_space<vmem>>, vector<1x256xf32>,
    %c10 = arith.constant 10 : index
    %45 = memref.load %arg1[%c10] : memref<32xi32, #tpu.memory_space<smem>>
    %46 = arith.index_cast %45 : i32 to index
    %c0_34 = arith.constant 0 : index
    %47 = vector.load %arg4[%46, %c0_34] : memref<128x256xf32, #tpu.memory_space<vmem>>, vector<1x256xf32>
    %c10_35 = arith.constant 10 : index
    %c0_36 = arith.constant 0 : index
    %48 = vector.load %arg5[%c10_35, %c0_36] : memref<128x256xf32, #tpu.memory_space<vmem>>, vector<1x256xf32>
    tpu.vector_store %arg5[%c10_35, %c0_36], %47 {strides = array<i32>} : memref<128x256xf32, #tpu.memory_space<vmem>>, vector<1x256xf32>,
    %c11 = arith.constant 11 : index
    %49 = memref.load %arg1[%c11] : memref<32xi32, #tpu.memory_space<smem>>
    %50 = arith.index_cast %49 : i32 to index
    %c0_37 = arith.constant 0 : index
    %51 = vector.load %arg4[%50, %c0_37] : memref<128x256xf32, #tpu.memory_space<vmem>>, vector<1x256xf32>
    %c11_38 = arith.constant 11 : index
    %c0_39 = arith.constant 0 : index
    %52 = vector.load %arg5[%c11_38, %c0_39] : memref<128x256xf32, #tpu.memory_space<vmem>>, vector<1x256xf32>
    tpu.vector_store %arg5[%c11_38, %c0_39], %51 {strides = array<i32>} : memref<128x256xf32, #tpu.memory_space<vmem>>, vector<1x256xf32>,
    %c12 = arith.constant 12 : index
    %53 = memref.load %arg1[%c12] : memref<32xi32, #tpu.memory_space<smem>>
    %54 = arith.index_cast %53 : i32 to index
    %c0_40 = arith.constant 0 : index
    %55 = vector.load %arg4[%54, %c0_40] : memref<128x256xf32, #tpu.memory_space<vmem>>, vector<1x256xf32>
    %c12_41 = arith.constant 12 : index
    %c0_42 = arith.constant 0 : index
    %56 = vector.load %arg5[%c12_41, %c0_42] : memref<128x256xf32, #tpu.memory_space<vmem>>, vector<1x256xf32>
    tpu.vector_store %arg5[%c12_41, %c0_42], %55 {strides = array<i32>} : memref<128x256xf32, #tpu.memory_space<vmem>>, vector<1x256xf32>,
    %c13 = arith.constant 13 : index
    %57 = memref.load %arg1[%c13] : memref<32xi32, #tpu.memory_space<smem>>
    %58 = arith.index_cast %57 : i32 to index
    %c0_43 = arith.constant 0 : index
    %59 = vector.load %arg4[%58, %c0_43] : memref<128x256xf32, #tpu.memory_space<vmem>>, vector<1x256xf32>
    %c13_44 = arith.constant 13 : index
    %c0_45 = arith.constant 0 : index
    %60 = vector.load %arg5[%c13_44, %c0_45] : memref<128x256xf32, #tpu.memory_space<vmem>>, vector<1x256xf32>
    tpu.vector_store %arg5[%c13_44, %c0_45], %59 {strides = array<i32>} : memref<128x256xf32, #tpu.memory_space<vmem>>, vector<1x256xf32>,
    %c14 = arith.constant 14 : index
    %61 = memref.load %arg1[%c14] : memref<32xi32, #tpu.memory_space<smem>>
    %62 = arith.index_cast %61 : i32 to index
    %c0_46 = arith.constant 0 : index
    %63 = vector.load %arg4[%62, %c0_46] : memref<128x256xf32, #tpu.memory_space<vmem>>, vector<1x256xf32>
    %c14_47 = arith.constant 14 : index
    %c0_48 = arith.constant 0 : index
    %64 = vector.load %arg5[%c14_47, %c0_48] : memref<128x256xf32, #tpu.memory_space<vmem>>, vector<1x256xf32>
    tpu.vector_store %arg5[%c14_47, %c0_48], %63 {strides = array<i32>} : memref<128x256xf32, #tpu.memory_space<vmem>>, vector<1x256xf32>,
    %c15 = arith.constant 15 : index
    %65 = memref.load %arg1[%c15] : memref<32xi32, #tpu.memory_space<smem>>
    %66 = arith.index_cast %65 : i32 to index
    %c0_49 = arith.constant 0 : index
    %67 = vector.load %arg4[%66, %c0_49] : memref<128x256xf32, #tpu.memory_space<vmem>>, vector<1x256xf32>
    %c15_50 = arith.constant 15 : index
    %c0_51 = arith.constant 0 : index
    %68 = vector.load %arg5[%c15_50, %c0_51] : memref<128x256xf32, #tpu.memory_space<vmem>>, vector<1x256xf32>
    tpu.vector_store %arg5[%c15_50, %c0_51], %67 {strides = array<i32>} : memref<128x256xf32, #tpu.memory_space<vmem>>, vector<1x256xf32>,
    %c16 = arith.constant 16 : index
    %69 = memref.load %arg1[%c16] : memref<32xi32, #tpu.memory_space<smem>>
    %70 = arith.index_cast %69 : i32 to index
    %c0_52 = arith.constant 0 : index
    %71 = vector.load %arg4[%70, %c0_52] : memref<128x256xf32, #tpu.memory_space<vmem>>, vector<1x256xf32>
    %c16_53 = arith.constant 16 : index
    %c0_54 = arith.constant 0 : index
    %72 = vector.load %arg5[%c16_53, %c0_54] : memref<128x256xf32, #tpu.memory_space<vmem>>, vector<1x256xf32>
    tpu.vector_store %arg5[%c16_53, %c0_54], %71 {strides = array<i32>} : memref<128x256xf32, #tpu.memory_space<vmem>>, vector<1x256xf32>,
    %c17 = arith.constant 17 : index
    %73 = memref.load %arg1[%c17] : memref<32xi32, #tpu.memory_space<smem>>
    %74 = arith.index_cast %73 : i32 to index
    %c0_55 = arith.constant 0 : index
    %75 = vector.load %arg4[%74, %c0_55] : memref<128x256xf32, #tpu.memory_space<vmem>>, vector<1x256xf32>
    %c17_56 = arith.constant 17 : index
    %c0_57 = arith.constant 0 : index
    %76 = vector.load %arg5[%c17_56, %c0_57] : memref<128x256xf32, #tpu.memory_space<vmem>>, vector<1x256xf32>
    tpu.vector_store %arg5[%c17_56, %c0_57], %75 {strides = array<i32>} : memref<128x256xf32, #tpu.memory_space<vmem>>, vector<1x256xf32>,
    %c18 = arith.constant 18 : index
    %77 = memref.load %arg1[%c18] : memref<32xi32, #tpu.memory_space<smem>>
    %78 = arith.index_cast %77 : i32 to index
    %c0_58 = arith.constant 0 : index
    %79 = vector.load %arg4[%78, %c0_58] : memref<128x256xf32, #tpu.memory_space<vmem>>, vector<1x256xf32>
    %c18_59 = arith.constant 18 : index
    %c0_60 = arith.constant 0 : index
    %80 = vector.load %arg5[%c18_59, %c0_60] : memref<128x256xf32, #tpu.memory_space<vmem>>, vector<1x256xf32>
    tpu.vector_store %arg5[%c18_59, %c0_60], %79 {strides = array<i32>} : memref<128x256xf32, #tpu.memory_space<vmem>>, vector<1x256xf32>,
    %c19 = arith.constant 19 : index
    %81 = memref.load %arg1[%c19] : memref<32xi32, #tpu.memory_space<smem>>
    %82 = arith.index_cast %81 : i32 to index
    %c0_61 = arith.constant 0 : index
    %83 = vector.load %arg4[%82, %c0_61] : memref<128x256xf32, #tpu.memory_space<vmem>>, vector<1x256xf32>
    %c19_62 = arith.constant 19 : index
    %c0_63 = arith.constant 0 : index
    %84 = vector.load %arg5[%c19_62, %c0_63] : memref<128x256xf32, #tpu.memory_space<vmem>>, vector<1x256xf32>
    tpu.vector_store %arg5[%c19_62, %c0_63], %83 {strides = array<i32>} : memref<128x256xf32, #tpu.memory_space<vmem>>, vector<1x256xf32>,
    %c20 = arith.constant 20 : index
    %85 = memref.load %arg1[%c20] : memref<32xi32, #tpu.memory_space<smem>>
    %86 = arith.index_cast %85 : i32 to index
    %c0_64 = arith.constant 0 : index
    %87 = vector.load %arg4[%86, %c0_64] : memref<128x256xf32, #tpu.memory_space<vmem>>, vector<1x256xf32>
    %c20_65 = arith.constant 20 : index
    %c0_66 = arith.constant 0 : index
    %88 = vector.load %arg5[%c20_65, %c0_66] : memref<128x256xf32, #tpu.memory_space<vmem>>, vector<1x256xf32>
    tpu.vector_store %arg5[%c20_65, %c0_66], %87 {strides = array<i32>} : memref<128x256xf32, #tpu.memory_space<vmem>>, vector<1x256xf32>,
    %c21 = arith.constant 21 : index
    %89 = memref.load %arg1[%c21] : memref<32xi32, #tpu.memory_space<smem>>
    %90 = arith.index_cast %89 : i32 to index
    %c0_67 = arith.constant 0 : index
    %91 = vector.load %arg4[%90, %c0_67] : memref<128x256xf32, #tpu.memory_space<vmem>>, vector<1x256xf32>
    %c21_68 = arith.constant 21 : index
    %c0_69 = arith.constant 0 : index
    %92 = vector.load %arg5[%c21_68, %c0_69] : memref<128x256xf32, #tpu.memory_space<vmem>>, vector<1x256xf32>
    tpu.vector_store %arg5[%c21_68, %c0_69], %91 {strides = array<i32>} : memref<128x256xf32, #tpu.memory_space<vmem>>, vector<1x256xf32>,
    %c22 = arith.constant 22 : index
    %93 = memref.load %arg1[%c22] : memref<32xi32, #tpu.memory_space<smem>>
    %94 = arith.index_cast %93 : i32 to index
    %c0_70 = arith.constant 0 : index
    %95 = vector.load %arg4[%94, %c0_70] : memref<128x256xf32, #tpu.memory_space<vmem>>, vector<1x256xf32>
    %c22_71 = arith.constant 22 : index
    %c0_72 = arith.constant 0 : index
    %96 = vector.load %arg5[%c22_71, %c0_72] : memref<128x256xf32, #tpu.memory_space<vmem>>, vector<1x256xf32>
    tpu.vector_store %arg5[%c22_71, %c0_72], %95 {strides = array<i32>} : memref<128x256xf32, #tpu.memory_space<vmem>>, vector<1x256xf32>,
    %c23 = arith.constant 23 : index
    %97 = memref.load %arg1[%c23] : memref<32xi32, #tpu.memory_space<smem>>
    %98 = arith.index_cast %97 : i32 to index
    %c0_73 = arith.constant 0 : index
    %99 = vector.load %arg4[%98, %c0_73] : memref<128x256xf32, #tpu.memory_space<vmem>>, vector<1x256xf32>
    %c23_74 = arith.constant 23 : index
    %c0_75 = arith.constant 0 : index
    %100 = vector.load %arg5[%c23_74, %c0_75] : memref<128x256xf32, #tpu.memory_space<vmem>>, vector<1x256xf32>
    tpu.vector_store %arg5[%c23_74, %c0_75], %99 {strides = array<i32>} : memref<128x256xf32, #tpu.memory_space<vmem>>, vector<1x256xf32>,
    %c24 = arith.constant 24 : index
    %101 = memref.load %arg1[%c24] : memref<32xi32, #tpu.memory_space<smem>>
    %102 = arith.index_cast %101 : i32 to index
    %c0_76 = arith.constant 0 : index
    %103 = vector.load %arg4[%102, %c0_76] : memref<128x256xf32, #tpu.memory_space<vmem>>, vector<1x256xf32>
    %c24_77 = arith.constant 24 : index
    %c0_78 = arith.constant 0 : index
    %104 = vector.load %arg5[%c24_77, %c0_78] : memref<128x256xf32, #tpu.memory_space<vmem>>, vector<1x256xf32>
    tpu.vector_store %arg5[%c24_77, %c0_78], %103 {strides = array<i32>} : memref<128x256xf32, #tpu.memory_space<vmem>>, vector<1x256xf32>,
    %c25 = arith.constant 25 : index
    %105 = memref.load %arg1[%c25] : memref<32xi32, #tpu.memory_space<smem>>
    %106 = arith.index_cast %105 : i32 to index
    %c0_79 = arith.constant 0 : index
    %107 = vector.load %arg4[%106, %c0_79] : memref<128x256xf32, #tpu.memory_space<vmem>>, vector<1x256xf32>
    %c25_80 = arith.constant 25 : index
    %c0_81 = arith.constant 0 : index
    %108 = vector.load %arg5[%c25_80, %c0_81] : memref<128x256xf32, #tpu.memory_space<vmem>>, vector<1x256xf32>
    tpu.vector_store %arg5[%c25_80, %c0_81], %107 {strides = array<i32>} : memref<128x256xf32, #tpu.memory_space<vmem>>, vector<1x256xf32>,
    %c26 = arith.constant 26 : index
    %109 = memref.load %arg1[%c26] : memref<32xi32, #tpu.memory_space<smem>>
    %110 = arith.index_cast %109 : i32 to index
    %c0_82 = arith.constant 0 : index
    %111 = vector.load %arg4[%110, %c0_82] : memref<128x256xf32, #tpu.memory_space<vmem>>, vector<1x256xf32>
    %c26_83 = arith.constant 26 : index
    %c0_84 = arith.constant 0 : index
    %112 = vector.load %arg5[%c26_83, %c0_84] : memref<128x256xf32, #tpu.memory_space<vmem>>, vector<1x256xf32>
    tpu.vector_store %arg5[%c26_83, %c0_84], %111 {strides = array<i32>} : memref<128x256xf32, #tpu.memory_space<vmem>>, vector<1x256xf32>,
    %c27 = arith.constant 27 : index
    %113 = memref.load %arg1[%c27] : memref<32xi32, #tpu.memory_space<smem>>
    %114 = arith.index_cast %113 : i32 to index
    %c0_85 = arith.constant 0 : index
    %115 = vector.load %arg4[%114, %c0_85] : memref<128x256xf32, #tpu.memory_space<vmem>>, vector<1x256xf32>
    %c27_86 = arith.constant 27 : index
    %c0_87 = arith.constant 0 : index
    %116 = vector.load %arg5[%c27_86, %c0_87] : memref<128x256xf32, #tpu.memory_space<vmem>>, vector<1x256xf32>
    tpu.vector_store %arg5[%c27_86, %c0_87], %115 {strides = array<i32>} : memref<128x256xf32, #tpu.memory_space<vmem>>, vector<1x256xf32>,
    %c28 = arith.constant 28 : index
    %117 = memref.load %arg1[%c28] : memref<32xi32, #tpu.memory_space<smem>>
    %118 = arith.index_cast %117 : i32 to index
    %c0_88 = arith.constant 0 : index
    %119 = vector.load %arg4[%118, %c0_88] : memref<128x256xf32, #tpu.memory_space<vmem>>, vector<1x256xf32>
    %c28_89 = arith.constant 28 : index
    %c0_90 = arith.constant 0 : index
    %120 = vector.load %arg5[%c28_89, %c0_90] : memref<128x256xf32, #tpu.memory_space<vmem>>, vector<1x256xf32>
    tpu.vector_store %arg5[%c28_89, %c0_90], %119 {strides = array<i32>} : memref<128x256xf32, #tpu.memory_space<vmem>>, vector<1x256xf32>,
    %c29 = arith.constant 29 : index
    %121 = memref.load %arg1[%c29] : memref<32xi32, #tpu.memory_space<smem>>
    %122 = arith.index_cast %121 : i32 to index
    %c0_91 = arith.constant 0 : index
    %123 = vector.load %arg4[%122, %c0_91] : memref<128x256xf32, #tpu.memory_space<vmem>>, vector<1x256xf32>
    %c29_92 = arith.constant 29 : index
    %c0_93 = arith.constant 0 : index
    %124 = vector.load %arg5[%c29_92, %c0_93] : memref<128x256xf32, #tpu.memory_space<vmem>>, vector<1x256xf32>
    tpu.vector_store %arg5[%c29_92, %c0_93], %123 {strides = array<i32>} : memref<128x256xf32, #tpu.memory_space<vmem>>, vector<1x256xf32>,
    %c30 = arith.constant 30 : index
    %125 = memref.load %arg1[%c30] : memref<32xi32, #tpu.memory_space<smem>>
    %126 = arith.index_cast %125 : i32 to index
    %c0_94 = arith.constant 0 : index
    %127 = vector.load %arg4[%126, %c0_94] : memref<128x256xf32, #tpu.memory_space<vmem>>, vector<1x256xf32>
    %c30_95 = arith.constant 30 : index
    %c0_96 = arith.constant 0 : index
    %128 = vector.load %arg5[%c30_95, %c0_96] : memref<128x256xf32, #tpu.memory_space<vmem>>, vector<1x256xf32>
    tpu.vector_store %arg5[%c30_95, %c0_96], %127 {strides = array<i32>} : memref<128x256xf32, #tpu.memory_space<vmem>>, vector<1x256xf32>,
    %c31 = arith.constant 31 : index
    %129 = memref.load %arg1[%c31] : memref<32xi32, #tpu.memory_space<smem>>
    %130 = arith.index_cast %129 : i32 to index
    %c0_97 = arith.constant 0 : index
    %131 = vector.load %arg4[%130, %c0_97] : memref<128x256xf32, #tpu.memory_space<vmem>>, vector<1x256xf32>
    %c31_98 = arith.constant 31 : index
    %c0_99 = arith.constant 0 : index
    %132 = vector.load %arg5[%c31_98, %c0_99] : memref<128x256xf32, #tpu.memory_space<vmem>>, vector<1x256xf32>
    tpu.vector_store %arg5[%c31_98, %c0_99], %131 {strides = array<i32>} : memref<128x256xf32, #tpu.memory_space<vmem>>, vector<1x256xf32>,
    %c0_100 = arith.constant 0 : index
    %c0_101 = arith.constant 0 : index
    %133 = vector.load %arg5[%c0_100, %c0_101] : memref<128x256xf32, #tpu.memory_space<vmem>>, vector<128x256xf32>
    %134 = tpu.transpose %133, [1, 0] : vector<128x256xf32> -> vector<256x128xf32>
    %135 = vector.extract_strided_slice %134 {offsets = [0, 0], sizes = [256, 32], strides = [1, 1]} : vector<256x128xf32> to vector<256x32xf32>
    %c0_102 = arith.constant 0 : index
    %c0_103 = arith.constant 0 : index
    %136 = vector.load %arg3[%c0_102, %c0_103] : memref<256x32xf32, #tpu.memory_space<vmem>>, vector<256x32xf32>
    tpu.vector_store %arg3[%c0_102, %c0_103], %135 {strides = array<i32>} : memref<256x32xf32, #tpu.memory_space<vmem>>, vector<256x32xf32>,
    return
  }
  func.func @transform_0(%arg0: i32, %arg1: memref<32xi32, #tpu.memory_space<smem>>) -> (i32, i32) {
    %c0_i32 = arith.constant 0 : i32
    %c0_i32_0 = arith.constant 0 : i32
    return %arg0, %c0_i32 : i32, i32
  }
  func.func @transform_1(%arg0: i32, %arg1: memref<32xi32, #tpu.memory_space<smem>>) -> (i32, i32) {
    %c0_i32 = arith.constant 0 : i32
    %c0_i32_0 = arith.constant 0 : i32
    return %arg0, %c0_i32 : i32, i32
  }
}

</mosaic_0001>

<llo_original>
// kernel: tpu_custom_call.1
$region0: #{tpu_custom_call.1}
  #allocation0 [shape = 'u32[]', space=smem, size = 0x4, offset = 0x4, fixed_abs, tag = 'smem constant byte address 0x4 - core index']
  #allocation1 [shape = 'u32[144,128]{1,0:T(1,128)}', space=vmem, size = 0x12000, scoped, tag = 'internal scratch']
  #allocation2 [shape = 'f32[128,256]{1,0:T(8,128)}', space=vmem, size = 0x20000, scoped, tag = 'scratch operand']
  #allocation3 [shape = 'f32[128,256]{1,0:T(8,128)}', space=vmem, size = 0x20000, scoped, tag = 'scratch operand']
  #allocation4 [shape = 's32[1]{0}', space=sflag, size = 0x4, scoped, tag = 'scoped memory for tpu_custom_call.1']
  #allocation5 [shape = 'u8[512]{0}', space=smem, size = 0x200, scoped, tag = 'prefetched SMEM operand 0']
  %s0 = inlined_call_operand.vmem [shape: s32[32], index: 0, kind: input, shape index: {}]
  %s1 = inlined_call_operand.vmem [shape: f32[512,64], index: 1, kind: input, shape index: {}]
  %s2 = inlined_call_operand.vmem [shape: f32[512,32], index: 2, kind: output, shape index: {}]
  %s3 = sld [smem:[#allocation0]]
  $region37: #{tpu_custom_call.1} parent=0
    _
  %s5 = ssub.s32 1, %s3
  %s6 = scalar_select 0, %s5, %s3
  %s7 = sshll.u32 %s0, 4
  %s8 = int_to_ptr.vmem [resolvable:$true] %s7
  %10 = dma.vmem_to_smem %s8, 16, [#allocation5], [#allocation4]
  %11 = dma.done [#allocation4], 16
  %12 = sfence
  loop: start=0, step=1, limit=4
  $region2: #{tpu_custom_call.1} parent=0 // loop_pre_header
    _
  $region3: #{tpu_custom_call.1} parent=0 // loop_header
    %s14 = sphi 0, %s18
    %p15 = scmp.ge.s32.totalorder %s14, 4
    %s24 = sphi 0, %s26
    %s27 = sphi 0, %s24
    %s28 = sphi 0, %s27
    %s44 = sphi 0, %s28
    %s50 = sphi 0, %s52
    %s53 = sphi 0, %s50
    %s54 = sphi 0, %s53
    %s70 = sphi 0, %s54
  $region4: #{tpu_custom_call.1} parent=0 // loop_header_branch
    %17 = sbr.rel (%p15) target = $region8
  $region5: #{tpu_custom_call.1} parent=0 // loop_body
    %s19 = ssub.s32 %s14, 1
    %s20 = ssub.s32 %s14, 2
    %s21 = sadd.s32 %s14, 1
    %s22 = ssub.s32 %s14, %s21
    %p23 = scmp.eq.s32.totalorder %s22, 0
    %s25 = sadd.s32 %s24, 1
    %s26 = scalar_select %p23, %s24, %s25
    %p29 = pneg %p23
    %p30 = scmp.eq.s32.totalorder %s14, 1
    %p31 = por %p29, %p30
    %p32 = scmp.ne.s32.totalorder %s24, %s27
    %p33 = scmp.eq.s32.totalorder %s14, 0
    %p34 = por %p32, %p33
    %p35 = scmp.ne.s32.totalorder %s24, %s27
    %p36 = scmp.eq.s32.totalorder %s19, 1
    %p37 = por %p35, %p36
    %p38 = scmp.ne.s32.totalorder %s27, %s28
    %p39 = scmp.eq.s32.totalorder %s19, 0
    %p40 = por %p38, %p39
    %p41 = scmp.ne.s32.totalorder %s27, %s28
    %p42 = scmp.eq.s32.totalorder %s20, 1
    %p43 = por %p41, %p42
    %p45 = scmp.ne.s32.totalorder %s28, %s44
    %p46 = scmp.eq.s32.totalorder %s20, 0
    %p47 = por %p45, %p46
    %s48 = ssub.s32 %s14, %s21
    %p49 = scmp.eq.s32.totalorder %s48, 0
    %s51 = sadd.s32 %s50, 1
    %s52 = scalar_select %p49, %s50, %s51
    %p55 = pneg %p49
    %p56 = scmp.eq.s32.totalorder %s14, 1
    %p57 = por %p55, %p56
    %p58 = scmp.ne.s32.totalorder %s50, %s53
    %p59 = scmp.eq.s32.totalorder %s14, 0
    %p60 = por %p58, %p59
    %p61 = scmp.ne.s32.totalorder %s50, %s53
    %p62 = scmp.eq.s32.totalorder %s19, 1
    %p63 = por %p61, %p62
    %p64 = scmp.ne.s32.totalorder %s53, %s54
    %p65 = scmp.eq.s32.totalorder %s19, 0
    %p66 = por %p64, %p65
    %p67 = scmp.ne.s32.totalorder %s53, %s54
    %p68 = scmp.eq.s32.totalorder %s20, 1
    %p69 = por %p67, %p68
    %p71 = scmp.ne.s32.totalorder %s54, %s70
    %p72 = scmp.eq.s32.totalorder %s20, 0
    %p73 = por %p71, %p72
    %p74 = scmp.le.s32.totalorder 1, %s14
    %p75 = scmp.lt.s32.totalorder %s14, 3
    %p76 = pnand %p74, %p75
    %p77 = pneg %p76
    // Predicated region
    $region9: #{tpu_custom_call.1} parent=5 // pred_check
      _
    $region10: #{tpu_custom_call.1} parent=5 // pred_check_branch
      %79 = sbr.rel (%p76) target = $region12
    $region11: #{tpu_custom_call.1} parent=5 // pred_region
      %s80 = ssub.s32 %s14, 1
    $region12: #{tpu_custom_call.1} parent=5 // pred_fallthru
      _
    %p81 = scmp.lt.s32.totalorder %s14, 2
    // Predicated region
    $region13: #{tpu_custom_call.1} parent=5 // pred_check
      %p82 = pneg %p81
    $region14: #{tpu_custom_call.1} parent=5 // pred_check_branch
      %84 = sbr.rel (%p82) target = $region16
    $region15: #{tpu_custom_call.1} parent=5 // pred_region
      // Predicated region
      $region17: #{tpu_custom_call.1} parent=15 // pred_check
        %p85 = pneg %p34
      $region18: #{tpu_custom_call.1} parent=15 // pred_check_branch
        %87 = sbr.rel (%p85) target = $region20
      $region19: #{tpu_custom_call.1} parent=15 // pred_region
        %s88 = smul.u32 32, %s14
        %p89 = scmp.lt.s32.totalorder %s88, 63
        %s90 = scalar_select %p89, %s88, 63
        %s91 = smul.addr %s90, 8
        %s92 = scalar_lea.vmem %s1, %s91
        %s93 = smul.u32 32, %s14
      $region20: #{tpu_custom_call.1} parent=15 // pred_fallthru
        _
    $region16: #{tpu_custom_call.1} parent=5 // pred_fallthru
      _
    %p94 = scmp.le.s32.totalorder 1, %s14
    %p95 = scmp.lt.s32.totalorder %s14, 3
    %p96 = pnand %p94, %p95
    %p97 = pneg %p96
    // Predicated region
    $region21: #{tpu_custom_call.1} parent=5 // pred_check
      _
    $region22: #{tpu_custom_call.1} parent=5 // pred_check_branch
      %99 = sbr.rel (%p96) target = $region24
    $region23: #{tpu_custom_call.1} parent=5 // pred_region
      %s100 = ssub.s32 %s14, 1
      %s101 = smul.u32 32, %s19
      %p102 = scmp.lt.s32.totalorder %s101, 63
      %s103 = scalar_select %p102, %s101, 63
      %s104 = smul.addr %s103, 8
      %s105 = scalar_lea.vmem %s1, %s104
      %p106 = pneg %p40
      %p107 = pneg %p37
      %p108 = pneg %p66
      %p109 = pneg %p63
      %s110 = smul.u32 32, %s19
      %p111 = scmp.lt.s32.totalorder %s110, 63
      %s112 = scalar_select %p111, %s110, 63
      %s113 = smul.addr %s112, 8
      %s114 = scalar_lea.vmem %s2, %s113
      %s115 = smul.u32 32, %s19
      %p116 = scmp.lt.s32.totalorder %s115, 63
      %s117 = scalar_select %p116, %s115, 63
      %s118 = smul.addr %s117, 8
      %s119 = scalar_lea.vmem %s1, %s118
      %s120 = smul.u32 32, %s19
      %s121 = smul.u32 32, %s19
      %p122 = scmp.lt.s32.totalorder %s121, 63
      %s123 = scalar_select %p122, %s121, 63
      %s124 = smul.addr %s123, 8
      %s125 = scalar_lea.vmem %s2, %s124
      %s126 = smul.u32 32, %s19
      %v127 = vld [vmem:[%s119] sm:$0xff]
      %v128 = vld [vmem:[%s119 + $0x8] sm:$0xff]
      %v129 = vld [vmem:[%s119 + $0x10] sm:$0xff]
      %v130 = vld [vmem:[%s119 + $0x18] sm:$0xff]
      %v131 = vld [vmem:[%s119 + $0x20] sm:$0xff]
      %v132 = vld [vmem:[%s119 + $0x28] sm:$0xff]
      %v133 = vld [vmem:[%s119 + $0x30] sm:$0xff]
      %v134 = vld [vmem:[%s119 + $0x38] sm:$0xff]
      %v135 = vld [vmem:[%s119 + $0x40] sm:$0xff]
      %v136 = vld [vmem:[%s119 + $0x48] sm:$0xff]
      %v137 = vld [vmem:[%s119 + $0x50] sm:$0xff]
      %v138 = vld [vmem:[%s119 + $0x58] sm:$0xff]
      %v139 = vld [vmem:[%s119 + $0x60] sm:$0xff]
      %v140 = vld [vmem:[%s119 + $0x68] sm:$0xff]
      %v141 = vld [vmem:[%s119 + $0x70] sm:$0xff]
      %v142 = vld [vmem:[%s119 + $0x78] sm:$0xff]
      %v143 = vld [vmem:[%s119 + $0x80] sm:$0xff]
      %v144 = vld [vmem:[%s119 + $0x88] sm:$0xff]
      %v145 = vld [vmem:[%s119 + $0x90] sm:$0xff]
      %v146 = vld [vmem:[%s119 + $0x98] sm:$0xff]
      %v147 = vld [vmem:[%s119 + $0xa0] sm:$0xff]
      %v148 = vld [vmem:[%s119 + $0xa8] sm:$0xff]
      %v149 = vld [vmem:[%s119 + $0xb0] sm:$0xff]
      %v150 = vld [vmem:[%s119 + $0xb8] sm:$0xff]
      %v151 = vld [vmem:[%s119 + $0xc0] sm:$0xff]
      %v152 = vld [vmem:[%s119 + $0xc8] sm:$0xff]
      %v153 = vld [vmem:[%s119 + $0xd0] sm:$0xff]
      %v154 = vld [vmem:[%s119 + $0xd8] sm:$0xff]
      %v155 = vld [vmem:[%s119 + $0xe0] sm:$0xff]
      %v156 = vld [vmem:[%s119 + $0xe8] sm:$0xff]
      %v157 = vld [vmem:[%s119 + $0xf0] sm:$0xff]
      %v158 = vld [vmem:[%s119 + $0xf8] sm:$0xff]
      %vm159 = vcmask 523264
      %v160 = vsel %vm159, %v127, 0.0
      %v161 = vsel %vm159, %v128, 0.0
      %v162 = vsel %vm159, %v129, 0.0
      %v163 = vsel %vm159, %v130, 0.0
      %v164 = vsel %vm159, %v131, 0.0
      %v165 = vsel %vm159, %v132, 0.0
      %v166 = vsel %vm159, %v133, 0.0
      %v167 = vsel %vm159, %v134, 0.0
      %v168 = vsel %vm159, %v135, 0.0
      %v169 = vsel %vm159, %v136, 0.0
      %v170 = vsel %vm159, %v137, 0.0
      %v171 = vsel %vm159, %v138, 0.0
      %v172 = vsel %vm159, %v139, 0.0
      %v173 = vsel %vm159, %v140, 0.0
      %v174 = vsel %vm159, %v141, 0.0
      %v175 = vsel %vm159, %v142, 0.0
      %v176 = vsel %vm159, %v143, 0.0
      %v177 = vsel %vm159, %v144, 0.0
      %v178 = vsel %vm159, %v145, 0.0
      %v179 = vsel %vm159, %v146, 0.0
      %v180 = vsel %vm159, %v147, 0.0
      %v181 = vsel %vm159, %v148, 0.0
      %v182 = vsel %vm159, %v149, 0.0
      %v183 = vsel %vm159, %v150, 0.0
      %v184 = vsel %vm159, %v151, 0.0
      %v185 = vsel %vm159, %v152, 0.0
      %v186 = vsel %vm159, %v153, 0.0
      %v187 = vsel %vm159, %v154, 0.0
      %v188 = vsel %vm159, %v155, 0.0
      %v189 = vsel %vm159, %v156, 0.0
      %v190 = vsel %vm159, %v157, 0.0
      %v191 = vsel %vm159, %v158, 0.0
      %192 = vxpose.xlu0.b32.start [1/16] %v160, 128
      %193 = vxpose.xlu0.b32.cont [2/16] %v161, 128
      %194 = vxpose.xlu0.b32.cont [3/16] %v162, 128
      %195 = vxpose.xlu0.b32.cont [4/16] %v163, 128
      %196 = vxpose.xlu0.b32.cont [5/16] %v164, 128
      %197 = vxpose.xlu0.b32.cont [6/16] %v165, 128
      %198 = vxpose.xlu0.b32.cont [7/16] %v166, 128
      %199 = vxpose.xlu0.b32.cont [8/16] %v167, 128
      %200 = vxpose.xlu0.b32.cont [9/16] %v168, 128
      %201 = vxpose.xlu0.b32.cont [10/16] %v169, 128
      %202 = vxpose.xlu0.b32.cont [11/16] %v170, 128
      %203 = vxpose.xlu0.b32.cont [12/16] %v171, 128
      %204 = vxpose.xlu0.b32.cont [13/16] %v172, 128
      %205 = vxpose.xlu0.b32.cont [14/16] %v173, 128
      %206 = vxpose.xlu0.b32.cont [15/16] %v174, 128
      %207 = vxpose.xlu0.b32.end [16/16] %v175, 128
      %v208 = vpop.trf.xlu0
      %v209 = vpop.trf.xlu0
      %v210 = vpop.trf.xlu0
      %v211 = vpop.trf.xlu0
      %v212 = vpop.trf.xlu0
      %v213 = vpop.trf.xlu0
      %v214 = vpop.trf.xlu0
      %v215 = vpop.trf.xlu0
      %v216 = vpop.trf.xlu0
      %v217 = vpop.trf.xlu0
      %v218 = vpop.trf.xlu0
      %v219 = vpop.trf.xlu0
      %v220 = vpop.trf.xlu0
      %v221 = vpop.trf.xlu0
      %v222 = vpop.trf.xlu0
      %v223 = vpop.trf.xlu0
      %224 = vxpose.xlu0.b32.start [1/16] %v176, 128
      %225 = vxpose.xlu0.b32.cont [2/16] %v177, 128
      %226 = vxpose.xlu0.b32.cont [3/16] %v178, 128
      %227 = vxpose.xlu0.b32.cont [4/16] %v179, 128
      %228 = vxpose.xlu0.b32.cont [5/16] %v180, 128
      %229 = vxpose.xlu0.b32.cont [6/16] %v181, 128
      %230 = vxpose.xlu0.b32.cont [7/16] %v182, 128
      %231 = vxpose.xlu0.b32.cont [8/16] %v183, 128
      %232 = vxpose.xlu0.b32.cont [9/16] %v184, 128
      %233 = vxpose.xlu0.b32.cont [10/16] %v185, 128
      %234 = vxpose.xlu0.b32.cont [11/16] %v186, 128
      %235 = vxpose.xlu0.b32.cont [12/16] %v187, 128
      %236 = vxpose.xlu0.b32.cont [13/16] %v188, 128
      %237 = vxpose.xlu0.b32.cont [14/16] %v189, 128
      %238 = vxpose.xlu0.b32.cont [15/16] %v190, 128
      %239 = vxpose.xlu0.b32.end [16/16] %v191, 128
      %v240 = vpop.trf.xlu0
      %v241 = vpop.trf.xlu0
      %v242 = vpop.trf.xlu0
      %v243 = vpop.trf.xlu0
      %v244 = vpop.trf.xlu0
      %v245 = vpop.trf.xlu0
      %v246 = vpop.trf.xlu0
      %v247 = vpop.trf.xlu0
      %v248 = vpop.trf.xlu0
      %v249 = vpop.trf.xlu0
      %v250 = vpop.trf.xlu0
      %v251 = vpop.trf.xlu0
      %v252 = vpop.trf.xlu0
      %v253 = vpop.trf.xlu0
      %v254 = vpop.trf.xlu0
      %v255 = vpop.trf.xlu0
      %256 = vst [vmem:[#allocation2] sm:$0xff] %v208
      %257 = vst [vmem:[#allocation2 + $0x8] sm:$0xff] %v240
      %258 = vst [vmem:[#allocation2 + $0x10] sm:$0xff] %v209
      %259 = vst [vmem:[#allocation2 + $0x18] sm:$0xff] %v241
      %260 = vst [vmem:[#allocation2 + $0x20] sm:$0xff] %v210
      %261 = vst [vmem:[#allocation2 + $0x28] sm:$0xff] %v242
      %262 = vst [vmem:[#allocation2 + $0x30] sm:$0xff] %v211
      %263 = vst [vmem:[#allocation2 + $0x38] sm:$0xff] %v243
      %264 = vst [vmem:[#allocation2 + $0x40] sm:$0xff] %v212
      %265 = vst [vmem:[#allocation2 + $0x48] sm:$0xff] %v244
      %266 = vst [vmem:[#allocation2 + $0x50] sm:$0xff] %v213
      %267 = vst [vmem:[#allocation2 + $0x58] sm:$0xff] %v245
      %268 = vst [vmem:[#allocation2 + $0x60] sm:$0xff] %v214
      %269 = vst [vmem:[#allocation2 + $0x68] sm:$0xff] %v246
      %270 = vst [vmem:[#allocation2 + $0x70] sm:$0xff] %v215
      %271 = vst [vmem:[#allocation2 + $0x78] sm:$0xff] %v247
      %272 = vst [vmem:[#allocation2 + $0x80] sm:$0xff] %v216
      %273 = vst [vmem:[#allocation2 + $0x88] sm:$0xff] %v248
      %274 = vst [vmem:[#allocation2 + $0x90] sm:$0xff] %v217
      %275 = vst [vmem:[#allocation2 + $0x98] sm:$0xff] %v249
      %276 = vst [vmem:[#allocation2 + $0xa0] sm:$0xff] %v218
      %277 = vst [vmem:[#allocation2 + $0xa8] sm:$0xff] %v250
      %278 = vst [vmem:[#allocation2 + $0xb0] sm:$0xff] %v219
      %279 = vst [vmem:[#allocation2 + $0xb8] sm:$0xff] %v251
      %280 = vst [vmem:[#allocation2 + $0xc0] sm:$0xff] %v220
      %281 = vst [vmem:[#allocation2 + $0xc8] sm:$0xff] %v252
      %282 = vst [vmem:[#allocation2 + $0xd0] sm:$0xff] %v221
      %283 = vst [vmem:[#allocation2 + $0xd8] sm:$0xff] %v253
      %284 = vst [vmem:[#allocation2 + $0xe0] sm:$0xff] %v222
      %285 = vst [vmem:[#allocation2 + $0xe8] sm:$0xff] %v254
      %286 = vst [vmem:[#allocation2 + $0xf0] sm:$0xff] %v223
      %287 = vst [vmem:[#allocation2 + $0xf8] sm:$0xff] %v255
      %s288 = sld [smem:[#allocation5]]
      %s289 = sshra.s32 %s288, 3
      %s290 = sand.u32 %s288, 7
      %s291 = sshra.s32 %s288, 3
      %s292 = sand.u32 %s288, 7
      %s293 = smul.u32 %s289, 2
      %s294 = smul.u32 %s293, 8
      %s295 = sadd.s32 %s294, %s292
      %s296 = scalar_lea.vmem [#allocation2], %s295
      %v297 = vld [vmem:[%s296] ss:$8 sm:$0x3]
      %v298 = vlaneseq
      %vm299 = vcmp.ge.s32.totalorder %v298, 0
      %vm300 = vcmp.lt.s32.totalorder %v298, 256
      %vm301 = vmand %vm299, %vm300
      %302 = vst.msk [vmem:[#allocation3] ss:$8 sm:$0x3] %vm301, %v297
      %303 = vst.msk [vmem:[#allocation3] ss:$8 sm:$0x0] %vm301, %v297
      %s304 = sld [smem:[#allocation5 + $0x1]]
      %s305 = sshra.s32 %s304, 3
      %s306 = sand.u32 %s304, 7
      %s307 = sshra.s32 %s304, 3
      %s308 = sand.u32 %s304, 7
      %s309 = smul.u32 %s305, 2
      %s310 = smul.u32 %s309, 8
      %s311 = sadd.s32 %s310, %s308
      %s312 = scalar_lea.vmem [#allocation2], %s311
      %v313 = vld [vmem:[%s312] ss:$8 sm:$0x3]
      %s314 = scalar_lea.vmem [#allocation3], 1
      %315 = vst.msk [vmem:[%s314] ss:$8 sm:$0x3] %vm301, %v313
      %316 = vst.msk [vmem:[%s314] ss:$8 sm:$0x0] %vm301, %v313
      %s317 = sld [smem:[#allocation5 + $0x2]]
      %s318 = sshra.s32 %s317, 3
      %s319 = sand.u32 %s317, 7
      %s320 = sshra.s32 %s317, 3
      %s321 = sand.u32 %s317, 7
      %s322 = smul.u32 %s318, 2
      %s323 = smul.u32 %s322, 8
      %s324 = sadd.s32 %s323, %s321
      %s325 = scalar_lea.vmem [#allocation2], %s324
      %v326 = vld [vmem:[%s325] ss:$8 sm:$0x3]
      %s327 = scalar_lea.vmem [#allocation3], 2
      %328 = vst.msk [vmem:[%s327] ss:$8 sm:$0x3] %vm301, %v326
      %329 = vst.msk [vmem:[%s327] ss:$8 sm:$0x0] %vm301, %v326
      %s330 = sld [smem:[#allocation5 + $0x3]]
      %s331 = sshra.s32 %s330, 3
      %s332 = sand.u32 %s330, 7
      %s333 = sshra.s32 %s330, 3
      %s334 = sand.u32 %s330, 7
      %s335 = smul.u32 %s331, 2
      %s336 = smul.u32 %s335, 8
      %s337 = sadd.s32 %s336, %s334
      %s338 = scalar_lea.vmem [#allocation2], %s337
      %v339 = vld [vmem:[%s338] ss:$8 sm:$0x3]
      %s340 = scalar_lea.vmem [#allocation3], 3
      %341 = vst.msk [vmem:[%s340] ss:$8 sm:$0x3] %vm301, %v339
      %342 = vst.msk [vmem:[%s340] ss:$8 sm:$0x0] %vm301, %v339
      %s343 = sld [smem:[#allocation5 + $0x4]]
      %s344 = sshra.s32 %s343, 3
      %s345 = sand.u32 %s343, 7
      %s346 = sshra.s32 %s343, 3
      %s347 = sand.u32 %s343, 7
      %s348 = smul.u32 %s344, 2
      %s349 = smul.u32 %s348, 8
      %s350 = sadd.s32 %s349, %s347
      %s351 = scalar_lea.vmem [#allocation2], %s350
      %v352 = vld [vmem:[%s351] ss:$8 sm:$0x3]
      %s353 = scalar_lea.vmem [#allocation3], 4
      %354 = vst.msk [vmem:[%s353] ss:$8 sm:$0x3] %vm301, %v352
      %355 = vst.msk [vmem:[%s353] ss:$8 sm:$0x0] %vm301, %v352
      %s356 = sld [smem:[#allocation5 + $0x5]]
      %s357 = sshra.s32 %s356, 3
      %s358 = sand.u32 %s356, 7
      %s359 = sshra.s32 %s356, 3
      %s360 = sand.u32 %s356, 7
      %s361 = smul.u32 %s357, 2
      %s362 = smul.u32 %s361, 8
      %s363 = sadd.s32 %s362, %s360
      %s364 = scalar_lea.vmem [#allocation2], %s363
      %v365 = vld [vmem:[%s364] ss:$8 sm:$0x3]
      %s366 = scalar_lea.vmem [#allocation3], 5
      %367 = vst.msk [vmem:[%s366] ss:$8 sm:$0x3] %vm301, %v365
      %368 = vst.msk [vmem:[%s366] ss:$8 sm:$0x0] %vm301, %v365
      %s369 = sld [smem:[#allocation5 + $0x6]]
      %s370 = sshra.s32 %s369, 3
      %s371 = sand.u32 %s369, 7
      %s372 = sshra.s32 %s369, 3
      %s373 = sand.u32 %s369, 7
      %s374 = smul.u32 %s370, 2
      %s375 = smul.u32 %s374, 8
      %s376 = sadd.s32 %s375, %s373
      %s377 = scalar_lea.vmem [#allocation2], %s376
      %v378 = vld [vmem:[%s377] ss:$8 sm:$0x3]
      %s379 = scalar_lea.vmem [#allocation3], 6
      %380 = vst.msk [vmem:[%s379] ss:$8 sm:$0x3] %vm301, %v378
      %381 = vst.msk [vmem:[%s379] ss:$8 sm:$0x0] %vm301, %v378
      %s382 = sld [smem:[#allocation5 + $0x7]]
      %s383 = sshra.s32 %s382, 3
      %s384 = sand.u32 %s382, 7
      %s385 = sshra.s32 %s382, 3
      %s386 = sand.u32 %s382, 7
      %s387 = smul.u32 %s383, 2
      %s388 = smul.u32 %s387, 8
      %s389 = sadd.s32 %s388, %s386
      %s390 = scalar_lea.vmem [#allocation2], %s389
      %v391 = vld [vmem:[%s390] ss:$8 sm:$0x3]
      %s392 = scalar_lea.vmem [#allocation3], 7
      %393 = vst.msk [vmem:[%s392] ss:$8 sm:$0x3] %vm301, %v391
      %394 = vst.msk [vmem:[%s392] ss:$8 sm:$0x0] %vm301, %v391
      %s395 = sld [smem:[#allocation5 + $0x8]]
      %s396 = sshra.s32 %s395, 3
      %s397 = sand.u32 %s395, 7
      %s398 = sshra.s32 %s395, 3
      %s399 = sand.u32 %s395, 7
      %s400 = smul.u32 %s396, 2
      %s401 = smul.u32 %s400, 8
      %s402 = sadd.s32 %s401, %s399
      %s403 = scalar_lea.vmem [#allocation2], %s402
      %v404 = vld [vmem:[%s403] ss:$8 sm:$0x3]
      %s405 = scalar_lea.vmem [#allocation3], 16
      %406 = vst.msk [vmem:[%s405] ss:$8 sm:$0x3] %vm301, %v404
      %407 = vst.msk [vmem:[%s405] ss:$8 sm:$0x0] %vm301, %v404
      %s408 = sld [smem:[#allocation5 + $0x9]]
      %s409 = sshra.s32 %s408, 3
      %s410 = sand.u32 %s408, 7
      %s411 = sshra.s32 %s408, 3
      %s412 = sand.u32 %s408, 7
      %s413 = smul.u32 %s409, 2
      %s414 = smul.u32 %s413, 8
      %s415 = sadd.s32 %s414, %s412
      %s416 = scalar_lea.vmem [#allocation2], %s415
      %v417 = vld [vmem:[%s416] ss:$8 sm:$0x3]
      %s418 = scalar_lea.vmem [#allocation3], 17
      %419 = vst.msk [vmem:[%s418] ss:$8 sm:$0x3] %vm301, %v417
      %420 = vst.msk [vmem:[%s418] ss:$8 sm:$0x0] %vm301, %v417
      %s421 = sld [smem:[#allocation5 + $0xa]]
      %s422 = sshra.s32 %s421, 3
      %s423 = sand.u32 %s421, 7
      %s424 = sshra.s32 %s421, 3
      %s425 = sand.u32 %s421, 7
      %s426 = smul.u32 %s422, 2
      %s427 = smul.u32 %s426, 8
      %s428 = sadd.s32 %s427, %s425
      %s429 = scalar_lea.vmem [#allocation2], %s428
      %v430 = vld [vmem:[%s429] ss:$8 sm:$0x3]
      %s431 = scalar_lea.vmem [#allocation3], 18
      %432 = vst.msk [vmem:[%s431] ss:$8 sm:$0x3] %vm301, %v430
      %433 = vst.msk [vmem:[%s431] ss:$8 sm:$0x0] %vm301, %v430
      %s434 = sld [smem:[#allocation5 + $0xb]]
      %s435 = sshra.s32 %s434, 3
      %s436 = sand.u32 %s434, 7
      %s437 = sshra.s32 %s434, 3
      %s438 = sand.u32 %s434, 7
      %s439 = smul.u32 %s435, 2
      %s440 = smul.u32 %s439, 8
      %s441 = sadd.s32 %s440, %s438
      %s442 = scalar_lea.vmem [#allocation2], %s441
      %v443 = vld [vmem:[%s442] ss:$8 sm:$0x3]
      %s444 = scalar_lea.vmem [#allocation3], 19
      %445 = vst.msk [vmem:[%s444] ss:$8 sm:$0x3] %vm301, %v443
      %446 = vst.msk [vmem:[%s444] ss:$8 sm:$0x0] %vm301, %v443
      %s447 = sld [smem:[#allocation5 + $0xc]]
      %s448 = sshra.s32 %s447, 3
      %s449 = sand.u32 %s447, 7
      %s450 = sshra.s32 %s447, 3
      %s451 = sand.u32 %s447, 7
      %s452 = smul.u32 %s448, 2
      %s453 = smul.u32 %s452, 8
      %s454 = sadd.s32 %s453, %s451
      %s455 = scalar_lea.vmem [#allocation2], %s454
      %v456 = vld [vmem:[%s455] ss:$8 sm:$0x3]
      %s457 = scalar_lea.vmem [#allocation3], 20
      %458 = vst.msk [vmem:[%s457] ss:$8 sm:$0x3] %vm301, %v456
      %459 = vst.msk [vmem:[%s457] ss:$8 sm:$0x0] %vm301, %v456
      %s460 = sld [smem:[#allocation5 + $0xd]]
      %s461 = sshra.s32 %s460, 3
      %s462 = sand.u32 %s460, 7
      %s463 = sshra.s32 %s460, 3
      %s464 = sand.u32 %s460, 7
      %s465 = smul.u32 %s461, 2
      %s466 = smul.u32 %s465, 8
      %s467 = sadd.s32 %s466, %s464
      %s468 = scalar_lea.vmem [#allocation2], %s467
      %v469 = vld [vmem:[%s468] ss:$8 sm:$0x3]
      %s470 = scalar_lea.vmem [#allocation3], 21
      %471 = vst.msk [vmem:[%s470] ss:$8 sm:$0x3] %vm301, %v469
      %472 = vst.msk [vmem:[%s470] ss:$8 sm:$0x0] %vm301, %v469
      %s473 = sld [smem:[#allocation5 + $0xe]]
      %s474 = sshra.s32 %s473, 3
      %s475 = sand.u32 %s473, 7
      %s476 = sshra.s32 %s473, 3
      %s477 = sand.u32 %s473, 7
      %s478 = smul.u32 %s474, 2
      %s479 = smul.u32 %s478, 8
      %s480 = sadd.s32 %s479, %s477
      %s481 = scalar_lea.vmem [#allocation2], %s480
      %v482 = vld [vmem:[%s481] ss:$8 sm:$0x3]
      %s483 = scalar_lea.vmem [#allocation3], 22
      %484 = vst.msk [vmem:[%s483] ss:$8 sm:$0x3] %vm301, %v482
      %485 = vst.msk [vmem:[%s483] ss:$8 sm:$0x0] %vm301, %v482
      %s486 = sld [smem:[#allocation5 + $0xf]]
      %s487 = sshra.s32 %s486, 3
      %s488 = sand.u32 %s486, 7
      %s489 = sshra.s32 %s486, 3
      %s490 = sand.u32 %s486, 7
      %s491 = smul.u32 %s487, 2
      %s492 = smul.u32 %s491, 8
      %s493 = sadd.s32 %s492, %s490
      %s494 = scalar_lea.vmem [#allocation2], %s493
      %v495 = vld [vmem:[%s494] ss:$8 sm:$0x3]
      %s496 = scalar_lea.vmem [#allocation3], 23
      %497 = vst.msk [vmem:[%s496] ss:$8 sm:$0x3] %vm301, %v495
      %498 = vst.msk [vmem:[%s496] ss:$8 sm:$0x0] %vm301, %v495
      %s499 = sld [smem:[#allocation5 + $0x10]]
      %s500 = sshra.s32 %s499, 3
      %s501 = sand.u32 %s499, 7
      %s502 = sshra.s32 %s499, 3
      %s503 = sand.u32 %s499, 7
      %s504 = smul.u32 %s500, 2
      %s505 = smul.u32 %s504, 8
      %s506 = sadd.s32 %s505, %s503
      %s507 = scalar_lea.vmem [#allocation2], %s506
      %v508 = vld [vmem:[%s507] ss:$8 sm:$0x3]
      %s509 = scalar_lea.vmem [#allocation3], 32
      %510 = vst.msk [vmem:[%s509] ss:$8 sm:$0x3] %vm301, %v508
      %511 = vst.msk [vmem:[%s509] ss:$8 sm:$0x0] %vm301, %v508
      %s512 = sld [smem:[#allocation5 + $0x11]]
      %s513 = sshra.s32 %s512, 3
      %s514 = sand.u32 %s512, 7
      %s515 = sshra.s32 %s512, 3
      %s516 = sand.u32 %s512, 7
      %s517 = smul.u32 %s513, 2
      %s518 = smul.u32 %s517, 8
      %s519 = sadd.s32 %s518, %s516
      %s520 = scalar_lea.vmem [#allocation2], %s519
      %v521 = vld [vmem:[%s520] ss:$8 sm:$0x3]
      %s522 = scalar_lea.vmem [#allocation3], 33
      %523 = vst.msk [vmem:[%s522] ss:$8 sm:$0x3] %vm301, %v521
      %524 = vst.msk [vmem:[%s522] ss:$8 sm:$0x0] %vm301, %v521
      %s525 = sld [smem:[#allocation5 + $0x12]]
      %s526 = sshra.s32 %s525, 3
      %s527 = sand.u32 %s525, 7
      %s528 = sshra.s32 %s525, 3
      %s529 = sand.u32 %s525, 7
      %s530 = smul.u32 %s526, 2
      %s531 = smul.u32 %s530, 8
      %s532 = sadd.s32 %s531, %s529
      %s533 = scalar_lea.vmem [#allocation2], %s532
      %v534 = vld [vmem:[%s533] ss:$8 sm:$0x3]
      %s535 = scalar_lea.vmem [#allocation3], 34
      %536 = vst.msk [vmem:[%s535] ss:$8 sm:$0x3] %vm301, %v534
      %537 = vst.msk [vmem:[%s535] ss:$8 sm:$0x0] %vm301, %v534
      %s538 = sld [smem:[#allocation5 + $0x13]]
      %s539 = sshra.s32 %s538, 3
      %s540 = sand.u32 %s538, 7
      %s541 = sshra.s32 %s538, 3
      %s542 = sand.u32 %s538, 7
      %s543 = smul.u32 %s539, 2
      %s544 = smul.u32 %s543, 8
      %s545 = sadd.s32 %s544, %s542
      %s546 = scalar_lea.vmem [#allocation2], %s545
      %v547 = vld [vmem:[%s546] ss:$8 sm:$0x3]
      %s548 = scalar_lea.vmem [#allocation3], 35
      %549 = vst.msk [vmem:[%s548] ss:$8 sm:$0x3] %vm301, %v547
      %550 = vst.msk [vmem:[%s548] ss:$8 sm:$0x0] %vm301, %v547
      %s551 = sld [smem:[#allocation5 + $0x14]]
      %s552 = sshra.s32 %s551, 3
      %s553 = sand.u32 %s551, 7
      %s554 = sshra.s32 %s551, 3
      %s555 = sand.u32 %s551, 7
      %s556 = smul.u32 %s552, 2
      %s557 = smul.u32 %s556, 8
      %s558 = sadd.s32 %s557, %s555
      %s559 = scalar_lea.vmem [#allocation2], %s558
      %v560 = vld [vmem:[%s559] ss:$8 sm:$0x3]
      %s561 = scalar_lea.vmem [#allocation3], 36
      %562 = vst.msk [vmem:[%s561] ss:$8 sm:$0x3] %vm301, %v560
      %563 = vst.msk [vmem:[%s561] ss:$8 sm:$0x0] %vm301, %v560
      %s564 = sld [smem:[#allocation5 + $0x15]]
      %s565 = sshra.s32 %s564, 3
      %s566 = sand.u32 %s564, 7
      %s567 = sshra.s32 %s564, 3
      %s568 = sand.u32 %s564, 7
      %s569 = smul.u32 %s565, 2
      %s570 = smul.u32 %s569, 8
      %s571 = sadd.s32 %s570, %s568
      %s572 = scalar_lea.vmem [#allocation2], %s571
      %v573 = vld [vmem:[%s572] ss:$8 sm:$0x3]
      %s574 = scalar_lea.vmem [#allocation3], 37
      %575 = vst.msk [vmem:[%s574] ss:$8 sm:$0x3] %vm301, %v573
      %576 = vst.msk [vmem:[%s574] ss:$8 sm:$0x0] %vm301, %v573
      %s577 = sld [smem:[#allocation5 + $0x16]]
      %s578 = sshra.s32 %s577, 3
      %s579 = sand.u32 %s577, 7
      %s580 = sshra.s32 %s577, 3
      %s581 = sand.u32 %s577, 7
      %s582 = smul.u32 %s578, 2
      %s583 = smul.u32 %s582, 8
      %s584 = sadd.s32 %s583, %s581
      %s585 = scalar_lea.vmem [#allocation2], %s584
      %v586 = vld [vmem:[%s585] ss:$8 sm:$0x3]
      %s587 = scalar_lea.vmem [#allocation3], 38
      %588 = vst.msk [vmem:[%s587] ss:$8 sm:$0x3] %vm301, %v586
      %589 = vst.msk [vmem:[%s587] ss:$8 sm:$0x0] %vm301, %v586
      %s590 = sld [smem:[#allocation5 + $0x17]]
      %s591 = sshra.s32 %s590, 3
      %s592 = sand.u32 %s590, 7
      %s593 = sshra.s32 %s590, 3
      %s594 = sand.u32 %s590, 7
      %s595 = smul.u32 %s591, 2
      %s596 = smul.u32 %s595, 8
      %s597 = sadd.s32 %s596, %s594
      %s598 = scalar_lea.vmem [#allocation2], %s597
      %v599 = vld [vmem:[%s598] ss:$8 sm:$0x3]
      %s600 = scalar_lea.vmem [#allocation3], 39
      %601 = vst.msk [vmem:[%s600] ss:$8 sm:$0x3] %vm301, %v599
      %602 = vst.msk [vmem:[%s600] ss:$8 sm:$0x0] %vm301, %v599
      %s603 = sld [smem:[#allocation5 + $0x18]]
      %s604 = sshra.s32 %s603, 3
      %s605 = sand.u32 %s603, 7
      %s606 = sshra.s32 %s603, 3
      %s607 = sand.u32 %s603, 7
      %s608 = smul.u32 %s604, 2
      %s609 = smul.u32 %s608, 8
      %s610 = sadd.s32 %s609, %s607
      %s611 = scalar_lea.vmem [#allocation2], %s610
      %v612 = vld [vmem:[%s611] ss:$8 sm:$0x3]
      %s613 = scalar_lea.vmem [#allocation3], 48
      %614 = vst.msk [vmem:[%s613] ss:$8 sm:$0x3] %vm301, %v612
      %615 = vst.msk [vmem:[%s613] ss:$8 sm:$0x0] %vm301, %v612
      %s616 = sld [smem:[#allocation5 + $0x19]]
      %s617 = sshra.s32 %s616, 3
      %s618 = sand.u32 %s616, 7
      %s619 = sshra.s32 %s616, 3
      %s620 = sand.u32 %s616, 7
      %s621 = smul.u32 %s617, 2
      %s622 = smul.u32 %s621, 8
      %s623 = sadd.s32 %s622, %s620
      %s624 = scalar_lea.vmem [#allocation2], %s623
      %v625 = vld [vmem:[%s624] ss:$8 sm:$0x3]
      %s626 = scalar_lea.vmem [#allocation3], 49
      %627 = vst.msk [vmem:[%s626] ss:$8 sm:$0x3] %vm301, %v625
      %628 = vst.msk [vmem:[%s626] ss:$8 sm:$0x0] %vm301, %v625
      %s629 = sld [smem:[#allocation5 + $0x1a]]
      %s630 = sshra.s32 %s629, 3
      %s631 = sand.u32 %s629, 7
      %s632 = sshra.s32 %s629, 3
      %s633 = sand.u32 %s629, 7
      %s634 = smul.u32 %s630, 2
      %s635 = smul.u32 %s634, 8
      %s636 = sadd.s32 %s635, %s633
      %s637 = scalar_lea.vmem [#allocation2], %s636
      %v638 = vld [vmem:[%s637] ss:$8 sm:$0x3]
      %s639 = scalar_lea.vmem [#allocation3], 50
      %640 = vst.msk [vmem:[%s639] ss:$8 sm:$0x3] %vm301, %v638
      %641 = vst.msk [vmem:[%s639] ss:$8 sm:$0x0] %vm301, %v638
      %s642 = sld [smem:[#allocation5 + $0x1b]]
      %s643 = sshra.s32 %s642, 3
      %s644 = sand.u32 %s642, 7
      %s645 = sshra.s32 %s642, 3
      %s646 = sand.u32 %s642, 7
      %s647 = smul.u32 %s643, 2
      %s648 = smul.u32 %s647, 8
      %s649 = sadd.s32 %s648, %s646
      %s650 = scalar_lea.vmem [#allocation2], %s649
      %v651 = vld [vmem:[%s650] ss:$8 sm:$0x3]
      %s652 = scalar_lea.vmem [#allocation3], 51
      %653 = vst.msk [vmem:[%s652] ss:$8 sm:$0x3] %vm301, %v651
      %654 = vst.msk [vmem:[%s652] ss:$8 sm:$0x0] %vm301, %v651
      %s655 = sld [smem:[#allocation5 + $0x1c]]
      %s656 = sshra.s32 %s655, 3
      %s657 = sand.u32 %s655, 7
      %s658 = sshra.s32 %s655, 3
      %s659 = sand.u32 %s655, 7
      %s660 = smul.u32 %s656, 2
      %s661 = smul.u32 %s660, 8
      %s662 = sadd.s32 %s661, %s659
      %s663 = scalar_lea.vmem [#allocation2], %s662
      %v664 = vld [vmem:[%s663] ss:$8 sm:$0x3]
      %s665 = scalar_lea.vmem [#allocation3], 52
      %666 = vst.msk [vmem:[%s665] ss:$8 sm:$0x3] %vm301, %v664
      %667 = vst.msk [vmem:[%s665] ss:$8 sm:$0x0] %vm301, %v664
      %s668 = sld [smem:[#allocation5 + $0x1d]]
      %s669 = sshra.s32 %s668, 3
      %s670 = sand.u32 %s668, 7
      %s671 = sshra.s32 %s668, 3
      %s672 = sand.u32 %s668, 7
      %s673 = smul.u32 %s669, 2
      %s674 = smul.u32 %s673, 8
      %s675 = sadd.s32 %s674, %s672
      %s676 = scalar_lea.vmem [#allocation2], %s675
      %v677 = vld [vmem:[%s676] ss:$8 sm:$0x3]
      %s678 = scalar_lea.vmem [#allocation3], 53
      %679 = vst.msk [vmem:[%s678] ss:$8 sm:$0x3] %vm301, %v677
      %680 = vst.msk [vmem:[%s678] ss:$8 sm:$0x0] %vm301, %v677
      %s681 = sld [smem:[#allocation5 + $0x1e]]
      %s682 = sshra.s32 %s681, 3
      %s683 = sand.u32 %s681, 7
      %s684 = sshra.s32 %s681, 3
      %s685 = sand.u32 %s681, 7
      %s686 = smul.u32 %s682, 2
      %s687 = smul.u32 %s686, 8
      %s688 = sadd.s32 %s687, %s685
      %s689 = scalar_lea.vmem [#allocation2], %s688
      %v690 = vld [vmem:[%s689] ss:$8 sm:$0x3]
      %s691 = scalar_lea.vmem [#allocation3], 54
      %692 = vst.msk [vmem:[%s691] ss:$8 sm:$0x3] %vm301, %v690
      %693 = vst.msk [vmem:[%s691] ss:$8 sm:$0x0] %vm301, %v690
      %s694 = sld [smem:[#allocation5 + $0x1f]]
      %s695 = sshra.s32 %s694, 3
      %s696 = sand.u32 %s694, 7
      %s697 = sshra.s32 %s694, 3
      %s698 = sand.u32 %s694, 7
      %s699 = smul.u32 %s695, 2
      %s700 = smul.u32 %s699, 8
      %s701 = sadd.s32 %s700, %s698
      %s702 = scalar_lea.vmem [#allocation2], %s701
      %v703 = vld [vmem:[%s702] ss:$8 sm:$0x3]
      %s704 = scalar_lea.vmem [#allocation3], 55
      %705 = vst.msk [vmem:[%s704] ss:$8 sm:$0x3] %vm301, %v703
      %706 = vst.msk [vmem:[%s704] ss:$8 sm:$0x0] %vm301, %v703
      %v707 = vld [vmem:[#allocation3] sm:$0xff]
      %v708 = vld [vmem:[#allocation3 + $0x8] sm:$0xff]
      %v709 = vld [vmem:[#allocation3 + $0x10] sm:$0xff]
      %v710 = vld [vmem:[#allocation3 + $0x18] sm:$0xff]
      %v711 = vld [vmem:[#allocation3 + $0x20] sm:$0xff]
      %v712 = vld [vmem:[#allocation3 + $0x28] sm:$0xff]
      %v713 = vld [vmem:[#allocation3 + $0x30] sm:$0xff]
      %v714 = vld [vmem:[#allocation3 + $0x38] sm:$0xff]
      %v715 = vld [vmem:[#allocation3 + $0x40] sm:$0xff]
      %v716 = vld [vmem:[#allocation3 + $0x48] sm:$0xff]
      %v717 = vld [vmem:[#allocation3 + $0x50] sm:$0xff]
      %v718 = vld [vmem:[#allocation3 + $0x58] sm:$0xff]
      %v719 = vld [vmem:[#allocation3 + $0x60] sm:$0xff]
      %v720 = vld [vmem:[#allocation3 + $0x68] sm:$0xff]
      %v721 = vld [vmem:[#allocation3 + $0x70] sm:$0xff]
      %v722 = vld [vmem:[#allocation3 + $0x78] sm:$0xff]
      %v723 = vld [vmem:[#allocation3 + $0x80] sm:$0xff]
      %v724 = vld [vmem:[#allocation3 + $0x88] sm:$0xff]
      %v725 = vld [vmem:[#allocation3 + $0x90] sm:$0xff]
      %v726 = vld [vmem:[#allocation3 + $0x98] sm:$0xff]
      %v727 = vld [vmem:[#allocation3 + $0xa0] sm:$0xff]
      %v728 = vld [vmem:[#allocation3 + $0xa8] sm:$0xff]
      %v729 = vld [vmem:[#allocation3 + $0xb0] sm:$0xff]
      %v730 = vld [vmem:[#allocation3 + $0xb8] sm:$0xff]
      %v731 = vld [vmem:[#allocation3 + $0xc0] sm:$0xff]
      %v732 = vld [vmem:[#allocation3 + $0xc8] sm:$0xff]
      %v733 = vld [vmem:[#allocation3 + $0xd0] sm:$0xff]
      %v734 = vld [vmem:[#allocation3 + $0xd8] sm:$0xff]
      %v735 = vld [vmem:[#allocation3 + $0xe0] sm:$0xff]
      %v736 = vld [vmem:[#allocation3 + $0xe8] sm:$0xff]
      %v737 = vld [vmem:[#allocation3 + $0xf0] sm:$0xff]
      %v738 = vld [vmem:[#allocation3 + $0xf8] sm:$0xff]
      %739 = vxpose.xlu0.b32.start [1/16] %v707, 128
      %740 = vxpose.xlu0.b32.cont [2/16] %v709, 128
      %741 = vxpose.xlu0.b32.cont [3/16] %v711, 128
      %742 = vxpose.xlu0.b32.cont [4/16] %v713, 128
      %743 = vxpose.xlu0.b32.cont [5/16] %v715, 128
      %744 = vxpose.xlu0.b32.cont [6/16] %v717, 128
      %745 = vxpose.xlu0.b32.cont [7/16] %v719, 128
      %746 = vxpose.xlu0.b32.cont [8/16] %v721, 128
      %747 = vxpose.xlu0.b32.cont [9/16] %v723, 128
      %748 = vxpose.xlu0.b32.cont [10/16] %v725, 128
      %749 = vxpose.xlu0.b32.cont [11/16] %v727, 128
      %750 = vxpose.xlu0.b32.cont [12/16] %v729, 128
      %751 = vxpose.xlu0.b32.cont [13/16] %v731, 128
      %752 = vxpose.xlu0.b32.cont [14/16] %v733, 128
      %753 = vxpose.xlu0.b32.cont [15/16] %v735, 128
      %754 = vxpose.xlu0.b32.end [16/16] %v737, 128
      %v755 = vpop.trf.xlu0
      %v756 = vpop.trf.xlu0
      %v757 = vpop.trf.xlu0
      %v758 = vpop.trf.xlu0
      %v759 = vpop.trf.xlu0
      %v760 = vpop.trf.xlu0
      %v761 = vpop.trf.xlu0
      %v762 = vpop.trf.xlu0
      %v763 = vpop.trf.xlu0
      %v764 = vpop.trf.xlu0
      %v765 = vpop.trf.xlu0
      %v766 = vpop.trf.xlu0
      %v767 = vpop.trf.xlu0
      %v768 = vpop.trf.xlu0
      %v769 = vpop.trf.xlu0
      %v770 = vpop.trf.xlu0
      %771 = vxpose.xlu0.b32.start [1/16] %v708, 128
      %772 = vxpose.xlu0.b32.cont [2/16] %v710, 128
      %773 = vxpose.xlu0.b32.cont [3/16] %v712, 128
      %774 = vxpose.xlu0.b32.cont [4/16] %v714, 128
      %775 = vxpose.xlu0.b32.cont [5/16] %v716, 128
      %776 = vxpose.xlu0.b32.cont [6/16] %v718, 128
      %777 = vxpose.xlu0.b32.cont [7/16] %v720, 128
      %778 = vxpose.xlu0.b32.cont [8/16] %v722, 128
      %779 = vxpose.xlu0.b32.cont [9/16] %v724, 128
      %780 = vxpose.xlu0.b32.cont [10/16] %v726, 128
      %781 = vxpose.xlu0.b32.cont [11/16] %v728, 128
      %782 = vxpose.xlu0.b32.cont [12/16] %v730, 128
      %783 = vxpose.xlu0.b32.cont [13/16] %v732, 128
      %784 = vxpose.xlu0.b32.cont [14/16] %v734, 128
      %785 = vxpose.xlu0.b32.cont [15/16] %v736, 128
      %786 = vxpose.xlu0.b32.end [16/16] %v738, 128
      %v787 = vpop.trf.xlu0
      %v788 = vpop.trf.xlu0
      %v789 = vpop.trf.xlu0
      %v790 = vpop.trf.xlu0
      %v791 = vpop.trf.xlu0
      %v792 = vpop.trf.xlu0
      %v793 = vpop.trf.xlu0
      %v794 = vpop.trf.xlu0
      %v795 = vpop.trf.xlu0
      %v796 = vpop.trf.xlu0
      %v797 = vpop.trf.xlu0
      %v798 = vpop.trf.xlu0
      %v799 = vpop.trf.xlu0
      %v800 = vpop.trf.xlu0
      %v801 = vpop.trf.xlu0
      %v802 = vpop.trf.xlu0
      %vm803 = vcmask 261120
      %804 = vst.msk [vmem:[%s125] sm:$0xff] %vm803, %v755
      %805 = vst.msk [vmem:[%s125 + $0x8] sm:$0xff] %vm803, %v756
      %806 = vst.msk [vmem:[%s125 + $0x10] sm:$0xff] %vm803, %v757
      %807 = vst.msk [vmem:[%s125 + $0x18] sm:$0xff] %vm803, %v758
      %808 = vst.msk [vmem:[%s125 + $0x20] sm:$0xff] %vm803, %v759
      %809 = vst.msk [vmem:[%s125 + $0x28] sm:$0xff] %vm803, %v760
      %810 = vst.msk [vmem:[%s125 + $0x30] sm:$0xff] %vm803, %v761
      %811 = vst.msk [vmem:[%s125 + $0x38] sm:$0xff] %vm803, %v762
      %812 = vst.msk [vmem:[%s125 + $0x40] sm:$0xff] %vm803, %v763
      %813 = vst.msk [vmem:[%s125 + $0x48] sm:$0xff] %vm803, %v764
      %814 = vst.msk [vmem:[%s125 + $0x50] sm:$0xff] %vm803, %v765
      %815 = vst.msk [vmem:[%s125 + $0x58] sm:$0xff] %vm803, %v766
      %816 = vst.msk [vmem:[%s125 + $0x60] sm:$0xff] %vm803, %v767
      %817 = vst.msk [vmem:[%s125 + $0x68] sm:$0xff] %vm803, %v768
      %818 = vst.msk [vmem:[%s125 + $0x70] sm:$0xff] %vm803, %v769
      %819 = vst.msk [vmem:[%s125 + $0x78] sm:$0xff] %vm803, %v770
      %820 = vst.msk [vmem:[%s125 + $0x80] sm:$0xff] %vm803, %v787
      %821 = vst.msk [vmem:[%s125 + $0x88] sm:$0xff] %vm803, %v788
      %822 = vst.msk [vmem:[%s125 + $0x90] sm:$0xff] %vm803, %v789
      %823 = vst.msk [vmem:[%s125 + $0x98] sm:$0xff] %vm803, %v790
      %824 = vst.msk [vmem:[%s125 + $0xa0] sm:$0xff] %vm803, %v791
      %825 = vst.msk [vmem:[%s125 + $0xa8] sm:$0xff] %vm803, %v792
      %826 = vst.msk [vmem:[%s125 + $0xb0] sm:$0xff] %vm803, %v793
      %827 = vst.msk [vmem:[%s125 + $0xb8] sm:$0xff] %vm803, %v794
      %828 = vst.msk [vmem:[%s125 + $0xc0] sm:$0xff] %vm803, %v795
      %829 = vst.msk [vmem:[%s125 + $0xc8] sm:$0xff] %vm803, %v796
      %830 = vst.msk [vmem:[%s125 + $0xd0] sm:$0xff] %vm803, %v797
      %831 = vst.msk [vmem:[%s125 + $0xd8] sm:$0xff] %vm803, %v798
      %832 = vst.msk [vmem:[%s125 + $0xe0] sm:$0xff] %vm803, %v799
      %833 = vst.msk [vmem:[%s125 + $0xe8] sm:$0xff] %vm803, %v800
      %834 = vst.msk [vmem:[%s125 + $0xf0] sm:$0xff] %vm803, %v801
      %835 = vst.msk [vmem:[%s125 + $0xf8] sm:$0xff] %vm803, %v802
      %s836 = smul.u32 32, %s19
      %p837 = scmp.lt.s32.totalorder %s836, 63
      %s838 = scalar_select %p837, %s836, 63
      %s839 = smul.addr %s838, 8
      %s840 = scalar_lea.vmem %s2, %s839
      // Predicated region
      $region25: #{tpu_custom_call.1} parent=23 // pred_check
        %p841 = pneg %p63
      $region26: #{tpu_custom_call.1} parent=23 // pred_check_branch
        %843 = sbr.rel (%p841) target = $region28
      $region27: #{tpu_custom_call.1} parent=23 // pred_region
        %s844 = smul.u32 32, %s19
      $region28: #{tpu_custom_call.1} parent=23 // pred_fallthru
        _
    $region24: #{tpu_custom_call.1} parent=5 // pred_fallthru
      _
    %p845 = scmp.le.s32.totalorder 2, %s14
    // Predicated region
    $region29: #{tpu_custom_call.1} parent=5 // pred_check
      %p846 = pneg %p845
    $region30: #{tpu_custom_call.1} parent=5 // pred_check_branch
      %848 = sbr.rel (%p846) target = $region32
    $region31: #{tpu_custom_call.1} parent=5 // pred_region
      %s849 = ssub.s32 %s14, 2
      // Predicated region
      $region33: #{tpu_custom_call.1} parent=31 // pred_check
        %p850 = pneg %p69
      $region34: #{tpu_custom_call.1} parent=31 // pred_check_branch
        %852 = sbr.rel (%p850) target = $region36
      $region35: #{tpu_custom_call.1} parent=31 // pred_region
        %s853 = smul.u32 32, %s20
        %p854 = scmp.lt.s32.totalorder %s853, 63
        %s855 = scalar_select %p854, %s853, 63
        %s856 = smul.addr %s855, 8
        %s857 = scalar_lea.vmem %s2, %s856
      $region36: #{tpu_custom_call.1} parent=31 // pred_fallthru
        _
    $region32: #{tpu_custom_call.1} parent=5 // pred_fallthru
      _
  $region6: #{tpu_custom_call.1} parent=0 // loop_footer
    %s18 = sadd.s32 1, %s14
  $region7: #{tpu_custom_call.1} parent=0 // loop_footer_branch
    %13 = sbr.rel target = $region3
  $region8: #{tpu_custom_call.1} parent=0 // loop_exit
    _

</llo_original>
